<compile_context>
chip_gen: v6e
topology: v6e:2x2x1
jax: 0.10.0
libtpu: 0.0.40
codegen_flags: <defaults>
</compile_context>

<pallas_src>
import jax
import jax.numpy as jnp
from jax.experimental import pallas as pl
from jax.experimental.pallas import tpu as pltpu

EPS = 1e-5
H = 128            # hidden width of fc1 / fc2
IN_F = 10          # fc1 input features
VEC_ROW = H        # first slab row holding the per-feature vectors
SLAB_ROWS = H + 16 # 144: keeps the bf16 (16, 128) sublane tiling aligned
NEG_BIG = -1e30    # softmax mask value for padded cluster lanes


def _bn_train(h, gamma, beta, inv_b):
    """Training-mode BatchNorm1d: biased batch variance, centered two-pass."""
    mean = jnp.sum(h, axis=0, keepdims=True) * inv_b
    c = h - mean
    var = jnp.sum(c * c, axis=0, keepdims=True) * inv_b
    return c * (jax.lax.rsqrt(var + EPS) * gamma) + beta


def mutual_net_kernel(x_ref, w_ref, out_ref):
    B = x_ref.shape[0]
    inv_b = 1.0 / B
    f32 = jnp.float32
    wdt = w_ref.dtype

    # Per-feature vectors (rows VEC_ROW..VEC_ROW+4 of the slab), upcast to f32.
    g1 = w_ref[VEC_ROW + 0:VEC_ROW + 1, 0:H].astype(f32)
    be1 = w_ref[VEC_ROW + 1:VEC_ROW + 2, 0:H].astype(f32)
    g2 = w_ref[VEC_ROW + 2:VEC_ROW + 3, 0:H].astype(f32)
    be2 = w_ref[VEC_ROW + 3:VEC_ROW + 4, 0:H].astype(f32)
    b3 = w_ref[VEC_ROW + 4:VEC_ROW + 5, 0:H].astype(f32)  # padded lanes = -1e30

    # fc1 (bias omitted: cancels exactly under training-mode BN) + bn1 + relu.
    x = x_ref[...].astype(wdt)                                    # (B, IN_F)
    h = jnp.dot(x, w_ref[0:IN_F, 0:H], preferred_element_type=f32)
    h = jnp.maximum(_bn_train(h, g1, be1, inv_b), 0.0)

    # fc2 (bias omitted) + bn2 + relu.
    h = jnp.dot(h.astype(wdt), w_ref[0:H, H:2 * H], preferred_element_type=f32)
    h = jnp.maximum(_bn_train(h, g2, be2, inv_b), 0.0)

    # fc3 (output lane-padded to 128) + softmax over features (dim=1).
    logits = jnp.dot(h.astype(wdt), w_ref[0:H, 2 * H:3 * H],
                     preferred_element_type=f32) + b3
    m = jnp.max(logits, axis=1, keepdims=True)
    e = jnp.exp(logits - m)                   # padded lanes -> exp(-huge) == 0
    denom = jnp.sum(e, axis=1, keepdims=True)
    # Exact division so each row sums to 1 (padded lanes are exactly 0).
    out_ref[...] = (e / denom).astype(out_ref.dtype)   # full-width (B,128) store


def pack_params(params, slab_dtype=jnp.bfloat16):
    """Pack all parameters into ONE (144, 384) slab (done once, outside jit)."""
    num_cluster = params["w3"].shape[1]
    slab = jnp.zeros((SLAB_ROWS, 3 * H), jnp.float32)
    slab = slab.at[:IN_F, 0:H].set(params["w1"])                     # fc1 weight
    slab = slab.at[:H, H:2 * H].set(params["w2"])                    # fc2 weight
    slab = slab.at[:H, 2 * H:2 * H + num_cluster].set(params["w3"])  # fc3 weight
    slab = slab.at[VEC_ROW + 0, 0:H].set(params["g1"][0])
    slab = slab.at[VEC_ROW + 1, 0:H].set(params["be1"][0])
    slab = slab.at[VEC_ROW + 2, 0:H].set(params["g2"][0])
    slab = slab.at[VEC_ROW + 3, 0:H].set(params["be2"][0])
    b3p = jnp.full((H,), NEG_BIG, jnp.float32).at[:num_cluster].set(params["b3"][0])
    slab = slab.at[VEC_ROW + 4, 0:H].set(b3p)
    return {"w_slab": slab.astype(slab_dtype), "num_cluster": num_cluster}


def mutual_net_forward(x, packed):
    """x: (B, 10) float32. packed: output of pack_params."""
    B = x.shape[0]
    num_cluster = packed["num_cluster"]
    slab = packed["w_slab"]
    vmem = pltpu.MemorySpace.VMEM

    flops = 2 * B * H * (3 * H)
    bytes_accessed = (int(x.size) * x.dtype.itemsize
                      + int(slab.size) * slab.dtype.itemsize
                      + B * H * 4)

    probs_padded = pl.pallas_call(
        mutual_net_kernel,
        out_shape=jax.ShapeDtypeStruct((B, H), jnp.float32),   # lane-dense output
        in_specs=[
            pl.BlockSpec(memory_space=vmem),   # x (B, 10)
            pl.BlockSpec(memory_space=vmem),   # parameter slab (144, 384)
        ],
        out_specs=pl.BlockSpec(memory_space=vmem),
        cost_estimate=pl.CostEstimate(flops=flops,
                                      transcendentals=B * H,
                                      bytes_accessed=bytes_accessed),
    )(x, slab)
    return probs_padded[:, :num_cluster]


def init_params(key, num_cluster):
    """Synthetic params matching nn.Linear / nn.BatchNorm1d shapes.

    Linear weights stored pre-transposed as (in, out); BN gamma=1, beta=0.
    b1/b2 are kept only for the f32 reference (they cancel under training BN).
    """
    k1, k2, k3, kb1, kb2, kb3 = jax.random.split(key, 6)
    scale = 0.1
    return {
        "w1": scale * jax.random.normal(k1, (IN_F, H), jnp.float32),
        "b1": scale * jax.random.normal(kb1, (1, H), jnp.float32),
        "g1": jnp.ones((1, H), jnp.float32),
        "be1": jnp.zeros((1, H), jnp.float32),
        "w2": scale * jax.random.normal(k2, (H, H), jnp.float32),
        "b2": scale * jax.random.normal(kb2, (1, H), jnp.float32),
        "g2": jnp.ones((1, H), jnp.float32),
        "be2": jnp.zeros((1, H), jnp.float32),
        "w3": scale * jax.random.normal(k3, (H, num_cluster), jnp.float32),
        "b3": scale * jax.random.normal(kb3, (1, num_cluster), jnp.float32),
    }


def mutual_net_matched_reference(x, packed):
    """Pure-JAX mirror of the kernel arithmetic (same bf16 slab, f32 accum)."""
    w = packed["w_slab"]
    B = x.shape[0]
    inv_b = 1.0 / B
    f32 = jnp.float32
    wdt = w.dtype
    g1 = w[VEC_ROW + 0:VEC_ROW + 1, 0:H].astype(f32)
    be1 = w[VEC_ROW + 1:VEC_ROW + 2, 0:H].astype(f32)
    g2 = w[VEC_ROW + 2:VEC_ROW + 3, 0:H].astype(f32)
    be2 = w[VEC_ROW + 3:VEC_ROW + 4, 0:H].astype(f32)
    b3 = w[VEC_ROW + 4:VEC_ROW + 5, 0:H].astype(f32)
    h = jnp.dot(x.astype(wdt), w[0:IN_F, 0:H], preferred_element_type=f32)
    h = jnp.maximum(_bn_train(h, g1, be1, inv_b), 0.0)
    h = jnp.dot(h.astype(wdt), w[0:H, H:2 * H], preferred_element_type=f32)
    h = jnp.maximum(_bn_train(h, g2, be2, inv_b), 0.0)
    logits = jnp.dot(h.astype(wdt), w[0:H, 2 * H:3 * H],
                     preferred_element_type=f32) + b3
    m = jnp.max(logits, axis=1, keepdims=True)
    e = jnp.exp(logits - m)
    probs = e / jnp.sum(e, axis=1, keepdims=True)
    return probs[:, :packed["num_cluster"]]


def _batchnorm_train_ref(h, gamma, beta):
    mean = jnp.mean(h, axis=0, keepdims=True)
    var = jnp.mean(jnp.square(h - mean), axis=0, keepdims=True)
    return (h - mean) * jax.lax.rsqrt(var + EPS) * gamma + beta


def mutual_net_reference(x, params):
    """Full-f32 reference of the PyTorch forward pass (biases included)."""
    h = x @ params["w1"] + params["b1"]
    h = jnp.maximum(_batchnorm_train_ref(h, params["g1"], params["be1"]), 0.0)
    h = h @ params["w2"] + params["b2"]
    h = jnp.maximum(_batchnorm_train_ref(h, params["g2"], params["be2"]), 0.0)
    logits = h @ params["w3"] + params["b3"]
    return jax.nn.softmax(logits, axis=1)


if __name__ == "__main__":
    key = jax.random.PRNGKey(0)
    kx, kp = jax.random.split(key)

    B = 8            # BatchNorm1d in training mode needs B > 1
    num_cluster = 16

    x = jax.random.normal(kx, (B, IN_F), jnp.float32)
    params = init_params(kp, num_cluster)
    packed = pack_params(params)          # bf16 parameter slab

    out = mutual_net_forward(x, packed)
    out = jax.block_until_ready(out)

    assert out.shape == (B, num_cluster)
    assert bool(jnp.all(jnp.isfinite(out)))

    # Exact softmax division -> rows sum to 1 up to f32 rounding.
    assert jnp.allclose(jnp.sum(out, axis=1), 1.0, atol=1e-4)

    # Tight check against a pure-JAX mirror of the kernel's exact arithmetic
    # (same bf16 weights, f32 accumulation).
    matched = mutual_net_matched_reference(x, packed)
    assert jnp.allclose(out, matched, atol=1e-4, rtol=1e-3)

    # Looser check against the full-f32 PyTorch-semantics reference; the gap is
    # purely the bf16 weight quantization (<~1e-3 on probabilities here).
    ref = mutual_net_reference(x, params)
    assert jnp.allclose(out, ref, atol=2e-2, rtol=2e-2)

    print("KERNEL_OK")
</pallas_src>

<mosaic_0001>
module attributes {stable_mosaic.version = 11 : i64} {
  func.func @mutual_net_kernel(%arg0: memref<8x10xf32, #tpu.memory_space<vmem>>, %arg1: memref<144x384xbf16, #tpu.memory_space<vmem>>, %arg2: memref<8x128xf32, #tpu.memory_space<vmem>>) attributes {dimension_semantics = [], scalar_prefetch = 0 : i64, scratch_operands = 0 : i64, tpu.core_type = #tpu.core_type<tc>} {
    %c128 = arith.constant 128 : index
    %c0 = arith.constant 0 : index
    %0 = vector.load %arg1[%c128, %c0] : memref<144x384xbf16, #tpu.memory_space<vmem>>, vector<1x128xbf16>
    %1 = arith.extf %0 : vector<1x128xbf16> to vector<1x128xf32>
    %c129 = arith.constant 129 : index
    %c0_0 = arith.constant 0 : index
    %2 = vector.load %arg1[%c129, %c0_0] : memref<144x384xbf16, #tpu.memory_space<vmem>>, vector<1x128xbf16>
    %3 = arith.extf %2 : vector<1x128xbf16> to vector<1x128xf32>
    %c130 = arith.constant 130 : index
    %c0_1 = arith.constant 0 : index
    %4 = vector.load %arg1[%c130, %c0_1] : memref<144x384xbf16, #tpu.memory_space<vmem>>, vector<1x128xbf16>
    %5 = arith.extf %4 : vector<1x128xbf16> to vector<1x128xf32>
    %c131 = arith.constant 131 : index
    %c0_2 = arith.constant 0 : index
    %6 = vector.load %arg1[%c131, %c0_2] : memref<144x384xbf16, #tpu.memory_space<vmem>>, vector<1x128xbf16>
    %7 = arith.extf %6 : vector<1x128xbf16> to vector<1x128xf32>
    %c132 = arith.constant 132 : index
    %c0_3 = arith.constant 0 : index
    %8 = vector.load %arg1[%c132, %c0_3] : memref<144x384xbf16, #tpu.memory_space<vmem>>, vector<1x128xbf16>
    %9 = arith.extf %8 : vector<1x128xbf16> to vector<1x128xf32>
    %c0_4 = arith.constant 0 : index
    %c0_5 = arith.constant 0 : index
    %10 = vector.load %arg0[%c0_4, %c0_5] : memref<8x10xf32, #tpu.memory_space<vmem>>, vector<8x10xf32>
    %11 = arith.truncf %10 : vector<8x10xf32> to vector<8x10xbf16>
    %c0_6 = arith.constant 0 : index
    %c0_7 = arith.constant 0 : index
    %12 = vector.load %arg1[%c0_6, %c0_7] : memref<144x384xbf16, #tpu.memory_space<vmem>>, vector<10x128xbf16>
    %cst = arith.constant dense<0.000000e+00> : vector<8x128xf32>
    %13 = tpu.matmul %11, %12, %cst {dimension_numbers = #tpu.dot_dimension_numbers<[1], [0], [0], [1], [0, 0, 1, 1], [], []>} : vector<8x10xbf16>, vector<10x128xbf16>, vector<8x128xf32> -> vector<8x128xf32>
    %cst_8 = arith.constant dense<0.000000e+00> : vector<128xf32>
    %14 = vector.multi_reduction <add>, %13, %cst_8 [0] : vector<8x128xf32> to vector<128xf32>
    %15 = vector.shape_cast %14 : vector<128xf32> to vector<1x128xf32>
    %cst_9 = arith.constant 1.250000e-01 : f32
    %16 = vector.broadcast %cst_9 : f32 to vector<1x128xf32>
    %17 = arith.mulf %15, %16 : vector<1x128xf32>
    %18 = vector.broadcast %17 : vector<1x128xf32> to vector<8x128xf32>
    %19 = arith.subf %13, %18 : vector<8x128xf32>
    %20 = arith.mulf %19, %19 : vector<8x128xf32>
    %cst_10 = arith.constant dense<0.000000e+00> : vector<128xf32>
    %21 = vector.multi_reduction <add>, %20, %cst_10 [0] : vector<8x128xf32> to vector<128xf32>
    %22 = vector.shape_cast %21 : vector<128xf32> to vector<1x128xf32>
    %cst_11 = arith.constant 1.250000e-01 : f32
    %23 = vector.broadcast %cst_11 : f32 to vector<1x128xf32>
    %24 = arith.mulf %22, %23 : vector<1x128xf32>
    %cst_12 = arith.constant 9.99999974E-6 : f32
    %25 = vector.broadcast %cst_12 : f32 to vector<1x128xf32>
    %26 = arith.addf %24, %25 : vector<1x128xf32>
    %27 = math.rsqrt %26 : vector<1x128xf32>
    %28 = arith.mulf %27, %1 : vector<1x128xf32>
    %29 = vector.broadcast %28 : vector<1x128xf32> to vector<8x128xf32>
    %30 = arith.mulf %19, %29 : vector<8x128xf32>
    %31 = vector.broadcast %3 : vector<1x128xf32> to vector<8x128xf32>
    %32 = arith.addf %30, %31 : vector<8x128xf32>
    %cst_13 = arith.constant 0.000000e+00 : f32
    %33 = vector.broadcast %cst_13 : f32 to vector<8x128xf32>
    %34 = arith.maximumf %32, %33 : vector<8x128xf32>
    %35 = arith.truncf %34 : vector<8x128xf32> to vector<8x128xbf16>
    %c0_14 = arith.constant 0 : index
    %c128_15 = arith.constant 128 : index
    %36 = vector.load %arg1[%c0_14, %c128_15] : memref<144x384xbf16, #tpu.memory_space<vmem>>, vector<128x128xbf16>
    %cst_16 = arith.constant dense<0.000000e+00> : vector<8x128xf32>
    %37 = tpu.matmul %35, %36, %cst_16 {dimension_numbers = #tpu.dot_dimension_numbers<[1], [0], [0], [1], [0, 0, 1, 1], [], []>} : vector<8x128xbf16>, vector<128x128xbf16>, vector<8x128xf32> -> vector<8x128xf32>
    %cst_17 = arith.constant dense<0.000000e+00> : vector<128xf32>
    %38 = vector.multi_reduction <add>, %37, %cst_17 [0] : vector<8x128xf32> to vector<128xf32>
    %39 = vector.shape_cast %38 : vector<128xf32> to vector<1x128xf32>
    %cst_18 = arith.constant 1.250000e-01 : f32
    %40 = vector.broadcast %cst_18 : f32 to vector<1x128xf32>
    %41 = arith.mulf %39, %40 : vector<1x128xf32>
    %42 = vector.broadcast %41 : vector<1x128xf32> to vector<8x128xf32>
    %43 = arith.subf %37, %42 : vector<8x128xf32>
    %44 = arith.mulf %43, %43 : vector<8x128xf32>
    %cst_19 = arith.constant dense<0.000000e+00> : vector<128xf32>
    %45 = vector.multi_reduction <add>, %44, %cst_19 [0] : vector<8x128xf32> to vector<128xf32>
    %46 = vector.shape_cast %45 : vector<128xf32> to vector<1x128xf32>
    %cst_20 = arith.constant 1.250000e-01 : f32
    %47 = vector.broadcast %cst_20 : f32 to vector<1x128xf32>
    %48 = arith.mulf %46, %47 : vector<1x128xf32>
    %cst_21 = arith.constant 9.99999974E-6 : f32
    %49 = vector.broadcast %cst_21 : f32 to vector<1x128xf32>
    %50 = arith.addf %48, %49 : vector<1x128xf32>
    %51 = math.rsqrt %50 : vector<1x128xf32>
    %52 = arith.mulf %51, %5 : vector<1x128xf32>
    %53 = vector.broadcast %52 : vector<1x128xf32> to vector<8x128xf32>
    %54 = arith.mulf %43, %53 : vector<8x128xf32>
    %55 = vector.broadcast %7 : vector<1x128xf32> to vector<8x128xf32>
    %56 = arith.addf %54, %55 : vector<8x128xf32>
    %cst_22 = arith.constant 0.000000e+00 : f32
    %57 = vector.broadcast %cst_22 : f32 to vector<8x128xf32>
    %58 = arith.maximumf %56, %57 : vector<8x128xf32>
    %59 = arith.truncf %58 : vector<8x128xf32> to vector<8x128xbf16>
    %c0_23 = arith.constant 0 : index
    %c256 = arith.constant 256 : index
    %60 = vector.load %arg1[%c0_23, %c256] : memref<144x384xbf16, #tpu.memory_space<vmem>>, vector<128x128xbf16>
    %cst_24 = arith.constant dense<0.000000e+00> : vector<8x128xf32>
    %61 = tpu.matmul %59, %60, %cst_24 {dimension_numbers = #tpu.dot_dimension_numbers<[1], [0], [0], [1], [0, 0, 1, 1], [], []>} : vector<8x128xbf16>, vector<128x128xbf16>, vector<8x128xf32> -> vector<8x128xf32>
    %62 = vector.broadcast %9 : vector<1x128xf32> to vector<8x128xf32>
    %63 = arith.addf %61, %62 : vector<8x128xf32>
    %cst_25 = arith.constant dense<0xFF800000> : vector<8xf32>
    %64 = vector.multi_reduction <maximumf>, %63, %cst_25 [1] : vector<8x128xf32> to vector<8xf32>
    %65 = vector.shape_cast %64 : vector<8xf32> to vector<8x1xf32>
    %66 = vector.broadcast %65 : vector<8x1xf32> to vector<8x128xf32>
    %67 = arith.subf %63, %66 : vector<8x128xf32>
    %68 = math.exp %67 : vector<8x128xf32>
    %cst_26 = arith.constant dense<0.000000e+00> : vector<8xf32>
    %69 = vector.multi_reduction <add>, %68, %cst_26 [1] : vector<8x128xf32> to vector<8xf32>
    %70 = vector.shape_cast %69 : vector<8xf32> to vector<8x1xf32>
    %71 = vector.broadcast %70 : vector<8x1xf32> to vector<8x128xf32>
    %72 = arith.divf %68, %71 : vector<8x128xf32>
    %c0_27 = arith.constant 0 : index
    %c0_28 = arith.constant 0 : index
    %73 = vector.load %arg2[%c0_27, %c0_28] : memref<8x128xf32, #tpu.memory_space<vmem>>, vector<8x128xf32>
    tpu.vector_store %arg2[%c0_27, %c0_28], %72 {strides = array<i32>} : memref<8x128xf32, #tpu.memory_space<vmem>>, vector<8x128xf32>,
    return
  }
}

</mosaic_0001>

<llo_original>
// kernel: tpu_custom_call.1
$region0: #{tpu_custom_call.1}
  #allocation0 [shape = 'u32[]', space=smem, size = 0x4, offset = 0x4, fixed_abs, tag = 'smem constant byte address 0x4 - core index']
  #allocation1 [shape = 'u32[144,128]{1,0:T(1,128)}', space=vmem, size = 0x12000, scoped, tag = 'internal scratch']
  %s0 = inlined_call_operand.hbm [shape: f32[8,10], index: 0, kind: input, shape index: {}]
  %s1 = inlined_call_operand.hbm [shape: bf16[144,384], index: 1, kind: input, shape index: {}]
  %s2 = inlined_call_operand.hbm [shape: f32[8,128], index: 2, kind: output, shape index: {}]
  %s3 = sld [smem:[#allocation0]]
  $region26: #{tpu_custom_call.1} parent=0
    _
  %s5 = ssub.s32 1, %s3
  %s6 = scalar_select 0, %s5, %s3
  $region1: #{tpu_custom_call.1} parent=0
    #allocation2 [shape = 'u8[4096]{0}', space=vmem, size = 0x1000, scoped, tag = 'input window, operand 0, single buffered']
    #allocation3 [shape = 's32[1]{0}', space=sflag, size = 0x4, scoped, tag = 'scoped memory for tpu_custom_call.1']
    #allocation4 [shape = 's32[1]{0}', space=sflag, size = 0x4, scoped, tag = 'scoped memory for tpu_custom_call.1']
    #allocation5 [shape = 'u8[110592]{0}', space=vmem, size = 0x1b000, scoped, tag = 'input window, operand 1, single buffered']
    #allocation6 [shape = 's32[1]{0}', space=sflag, size = 0x4, scoped, tag = 'scoped memory for tpu_custom_call.1']
    #allocation7 [shape = 'u8[4096]{0}', space=vmem, size = 0x1000, scoped, tag = 'output window, operand 0, single buffered']
    %7 = vsyncpa [#allocation3], 0
    %8 = vsyncpa [#allocation6], 0
    %9 = vsyncpa [#allocation4], 0
    // Predicated region
    $region2: #{tpu_custom_call.1} parent=1 // pred_check
      _
    $region3: #{tpu_custom_call.1} parent=1 // pred_check_branch
      %11 = sbr.rel (0) target = $region5
    $region4: #{tpu_custom_call.1} parent=1 // pred_region
      %s13 = ssub.s32 128, 128
      %14 = vsyncadd [#allocation3], %s13
      %s16 = sshll.u32 [#allocation2], 4
      %s17 = int_to_ptr.vmem [resolvable:$true] %s16
      %19 = dma.hbm_to_vmem [thread:$0]  %s0, 128, %s17, [#allocation3]
    $region5: #{tpu_custom_call.1} parent=1 // pred_fallthru
      _
    // Predicated region
    $region6: #{tpu_custom_call.1} parent=1 // pred_check
      _
    $region7: #{tpu_custom_call.1} parent=1 // pred_check_branch
      %21 = sbr.rel (0) target = $region9
    $region8: #{tpu_custom_call.1} parent=1 // pred_region
      %s23 = ssub.s32 3456, 3456
      %24 = vsyncadd [#allocation6], %s23
      %s25 = sshll.u32 [#allocation5], 4
      %s26 = int_to_ptr.vmem [resolvable:$true] %s25
      %31 = dma.hbm_to_vmem [thread:$0]  %s1, 3456, %s26, [#allocation6], 192, 192, 12
    $region9: #{tpu_custom_call.1} parent=1 // pred_fallthru
      _
    // Predicated region
    $region10: #{tpu_custom_call.1} parent=1 // pred_check
      _
    $region11: #{tpu_custom_call.1} parent=1 // pred_check_branch
      %33 = sbr.rel (0) target = $region13
    $region12: #{tpu_custom_call.1} parent=1 // pred_region
      %34 = dma.done [#allocation3], 128
    $region13: #{tpu_custom_call.1} parent=1 // pred_fallthru
      _
    // Predicated region
    $region14: #{tpu_custom_call.1} parent=1 // pred_check
      _
    $region15: #{tpu_custom_call.1} parent=1 // pred_check_branch
      %36 = sbr.rel (0) target = $region17
    $region16: #{tpu_custom_call.1} parent=1 // pred_region
      %37 = dma.done [#allocation6], 3456
    $region17: #{tpu_custom_call.1} parent=1 // pred_fallthru
      _
    %v39 = vld [vmem:[#allocation5 + $0xc0] sm:$0x1]
    %v40 = vunpack.c.l.bf16 %v39
    %v41 = vld [vmem:[#allocation5 + $0xc0] sm:$0x2]
    %v42 = vunpack.c.l.bf16 %v41
    %v43 = vld [vmem:[#allocation5 + $0xc0] sm:$0x4]
    %v44 = vunpack.c.l.bf16 %v43
    %v45 = vld [vmem:[#allocation2] sm:$0xff]
    %v46 = vpack.c.bf16 %v45, %v45
    %v47 = vld [vmem:[#allocation5] sm:$0xf]
    %v48 = vld [vmem:[#allocation5 + $0xc] sm:$0x1]
    %v51 = vunpack.c.l.b16 %v47
    %v52 = vunpack.c.l.b16 %v48
    %v53 = vpack.c.b16 %v52, %v51
    %vm54 = vcmask 80896
    %v56 = vsel %vm54, %v46, 0
    %vm58 = vcmask 1044480
    %v60 = vsel %vm58, %v53, 0
    %62 = vmatprep.subr.bf16.mxu0 0
    %63 = vmatpush1.bf16.msra.mxu0 0
    %64 = vmatprep.subr.bf16.mxu0 0
    %65 = vmatpush1.bf16.msra.mxu0 0
    %66 = vmatprep.subr.bf16.mxu0 0
    %67 = vmatpush1.bf16.msra.mxu0 0
    %68 = vmatprep.subr.bf16.mxu0 0
    %69 = vmatpush1.bf16.msra.mxu0 0
    %70 = vmatprep.subr.bf16.mxu0 0
    %71 = vmatpush1.bf16.msra.mxu0 0
    %72 = vmatprep.subr.bf16.mxu0 0
    %73 = vmatpush1.bf16.msra.mxu0 0
    %74 = vmatprep.subr.bf16.mxu0 0
    %75 = vmatpush1.bf16.msra.mxu0 0
    %76 = vmatprep.subr.bf16.mxu0 0
    %77 = vmatpush1.bf16.msra.mxu0 %v60
    %78 = vmatprep.subr.bf16.mxu0 0
    %79 = vmatpush2.bf16.msra.mxu0 0
    %80 = vmatprep.subr.bf16.mxu0 0
    %81 = vmatpush2.bf16.msra.mxu0 0
    %82 = vmatprep.subr.bf16.mxu0 0
    %83 = vmatpush2.bf16.msra.mxu0 0
    %84 = vmatprep.subr.bf16.mxu0 0
    %85 = vmatpush2.bf16.msra.mxu0 0
    %86 = vmatprep.subr.bf16.mxu0 0
    %87 = vmatpush2.bf16.msra.mxu0 0
    %88 = vmatprep.subr.bf16.mxu0 0
    %89 = vmatpush2.bf16.msra.mxu0 0
    %90 = vmatprep.subr.bf16.mxu0 0
    %91 = vmatpush2.bf16.msra.mxu0 0
    %92 = vmatprep.subr.bf16.mxu0 0
    %93 = vmatpush2.bf16.msra.mxu0 0
    %94 = vmatprep.mubr.bf16.mxu0 0
    %95 = vmatmul.mubr.bf16.gmra.mxu0 %v56
    %v96 = vpop.f32.mrf.mxu0
    %v97 = vadd.f32 0.0, %v96
    %v98 = vpop.f32.mrf.mxu0
    %v99 = vpop.f32.mrf.mxu0
    %v100 = vpop.f32.mrf.mxu0
    %101 = vdwg.mxu0
    %v102 = vrot.slane %v97, 4
    %v103 = vadd.f32 %v97, %v102
    %v104 = vrot.slane %v103, 2
    %v105 = vadd.f32 %v103, %v104
    %v106 = vrot.slane %v105, 1
    %v107 = vadd.f32 %v105, %v106
    %v108 = vmul.f32 %v107, 0.125
    %v109 = vsub.f32 %v97, %v108
    %v110 = vmul.f32 %v109, %v109
    %v111 = vrot.slane %v110, 4
    %v112 = vadd.f32 %v110, %v111
    %v113 = vrot.slane %v112, 2
    %v114 = vadd.f32 %v112, %v113
    %v115 = vrot.slane %v114, 1
    %v116 = vadd.f32 %v114, %v115
    %v117 = vmul.f32 %v116, 0.125
    %v118 = vadd.f32 %v117, 1e-05
    %v119 = vrsqrt.pop %v118
    %v120 = vmul.f32 %v119, %v40
    %v121 = vlaneseq
    %v122 = vshrl.u32 %v121, 7
    %v123 = vsub.s32 0, %v122
    %v124 = vrot.slane %v120, %v123
    %v125 = vmul.f32 %v109, %v124
    %v126 = vlaneseq
    %v127 = vshrl.u32 %v126, 7
    %v128 = vsub.s32 1, %v127
    %v129 = vrot.slane %v40, %v128
    %v130 = vadd.f32 %v125, %v129
    %v131 = vmax.f32 %v130, 0.0
    %v132 = vpack.c.bf16 %v131, %v131
    %v133 = vld [vmem:[#allocation5 + $0x4] sm:$0xf]
    %v134 = vld [vmem:[#allocation5 + $0x10] sm:$0xf]
    %v135 = vld [vmem:[#allocation5 + $0x1c] sm:$0xf]
    %v136 = vld [vmem:[#allocation5 + $0x28] sm:$0xf]
    %v137 = vld [vmem:[#allocation5 + $0x34] sm:$0xf]
    %v138 = vld [vmem:[#allocation5 + $0x40] sm:$0xf]
    %v139 = vld [vmem:[#allocation5 + $0x4c] sm:$0xf]
    %v140 = vld [vmem:[#allocation5 + $0x58] sm:$0xf]
    %v141 = vld [vmem:[#allocation5 + $0x64] sm:$0xf]
    %v142 = vld [vmem:[#allocation5 + $0x70] sm:$0xf]
    %v143 = vld [vmem:[#allocation5 + $0x7c] sm:$0xf]
    %v144 = vld [vmem:[#allocation5 + $0x88] sm:$0xf]
    %v145 = vld [vmem:[#allocation5 + $0x94] sm:$0xf]
    %v146 = vld [vmem:[#allocation5 + $0xa0] sm:$0xf]
    %v147 = vld [vmem:[#allocation5 + $0xac] sm:$0xf]
    %v148 = vld [vmem:[#allocation5 + $0xb8] sm:$0xf]
    %v165 = vunpack.c.l.b16 %v133
    %v166 = vunpack.c.l.b16 %v134
    %v167 = vunpack.c.l.b16 %v135
    %v168 = vunpack.c.l.b16 %v136
    %v169 = vunpack.c.l.b16 %v137
    %v170 = vunpack.c.l.b16 %v138
    %v171 = vunpack.c.l.b16 %v139
    %v172 = vunpack.c.l.b16 %v140
    %v173 = vunpack.c.l.b16 %v141
    %v174 = vunpack.c.l.b16 %v142
    %v175 = vunpack.c.l.b16 %v143
    %v176 = vunpack.c.l.b16 %v144
    %v177 = vunpack.c.l.b16 %v145
    %v178 = vunpack.c.l.b16 %v146
    %v179 = vunpack.c.l.b16 %v147
    %v180 = vunpack.c.l.b16 %v148
    %v181 = vpack.c.b16 %v166, %v165
    %v182 = vpack.c.b16 %v168, %v167
    %v183 = vpack.c.b16 %v170, %v169
    %v184 = vpack.c.b16 %v172, %v171
    %v185 = vpack.c.b16 %v174, %v173
    %v186 = vpack.c.b16 %v176, %v175
    %v187 = vpack.c.b16 %v178, %v177
    %v188 = vpack.c.b16 %v180, %v179
    %197 = vmatprep.subr.bf16.mxu0 0
    %198 = vmatpush1.bf16.msra.mxu0 %v188
    %199 = vmatprep.subr.bf16.mxu0 0
    %200 = vmatpush1.bf16.msra.mxu0 %v187
    %201 = vmatprep.subr.bf16.mxu0 0
    %202 = vmatpush1.bf16.msra.mxu0 %v186
    %203 = vmatprep.subr.bf16.mxu0 0
    %204 = vmatpush1.bf16.msra.mxu0 %v185
    %205 = vmatprep.subr.bf16.mxu0 0
    %206 = vmatpush1.bf16.msra.mxu0 %v184
    %207 = vmatprep.subr.bf16.mxu0 0
    %208 = vmatpush1.bf16.msra.mxu0 %v183
    %209 = vmatprep.subr.bf16.mxu0 0
    %210 = vmatpush1.bf16.msra.mxu0 %v182
    %211 = vmatprep.subr.bf16.mxu0 0
    %212 = vmatpush1.bf16.msra.mxu0 %v181
    %213 = vmatprep.subr.bf16.mxu0 0
    %214 = vmatpush2.bf16.msra.mxu0 0
    %215 = vmatprep.subr.bf16.mxu0 0
    %216 = vmatpush2.bf16.msra.mxu0 0
    %217 = vmatprep.subr.bf16.mxu0 0
    %218 = vmatpush2.bf16.msra.mxu0 0
    %219 = vmatprep.subr.bf16.mxu0 0
    %220 = vmatpush2.bf16.msra.mxu0 0
    %221 = vmatprep.subr.bf16.mxu0 0
    %222 = vmatpush2.bf16.msra.mxu0 0
    %223 = vmatprep.subr.bf16.mxu0 0
    %224 = vmatpush2.bf16.msra.mxu0 0
    %225 = vmatprep.subr.bf16.mxu0 0
    %226 = vmatpush2.bf16.msra.mxu0 0
    %227 = vmatprep.subr.bf16.mxu0 0
    %228 = vmatpush2.bf16.msra.mxu0 0
    %229 = vmatprep.mubr.bf16.mxu0 0
    %230 = vmatmul.mubr.bf16.gmra.mxu0 %v132
    %v231 = vpop.f32.mrf.mxu0
    %v232 = vadd.f32 0.0, %v231
    %v233 = vpop.f32.mrf.mxu0
    %v234 = vpop.f32.mrf.mxu0
    %v235 = vpop.f32.mrf.mxu0
    %236 = vdwg.mxu0
    %v237 = vrot.slane %v232, 4
    %v238 = vadd.f32 %v232, %v237
    %v239 = vrot.slane %v238, 2
    %v240 = vadd.f32 %v238, %v239
    %v241 = vrot.slane %v240, 1
    %v242 = vadd.f32 %v240, %v241
    %v243 = vmul.f32 %v242, 0.125
    %v244 = vsub.f32 %v232, %v243
    %v245 = vmul.f32 %v244, %v244
    %v246 = vrot.slane %v245, 4
    %v247 = vadd.f32 %v245, %v246
    %v248 = vrot.slane %v247, 2
    %v249 = vadd.f32 %v247, %v248
    %v250 = vrot.slane %v249, 1
    %v251 = vadd.f32 %v249, %v250
    %v252 = vmul.f32 %v251, 0.125
    %v253 = vadd.f32 %v252, 1e-05
    %v254 = vrsqrt.pop %v253
    %v255 = vmul.f32 %v254, %v42
    %v256 = vlaneseq
    %v257 = vshrl.u32 %v256, 7
    %v258 = vsub.s32 2, %v257
    %v259 = vrot.slane %v255, %v258
    %v260 = vmul.f32 %v244, %v259
    %v261 = vlaneseq
    %v262 = vshrl.u32 %v261, 7
    %v263 = vsub.s32 3, %v262
    %v264 = vrot.slane %v42, %v263
    %v265 = vadd.f32 %v260, %v264
    %v266 = vmax.f32 %v265, 0.0
    %v267 = vpack.c.bf16 %v266, %v266
    %v268 = vld [vmem:[#allocation5 + $0x8] sm:$0xf]
    %v269 = vld [vmem:[#allocation5 + $0x14] sm:$0xf]
    %v270 = vld [vmem:[#allocation5 + $0x20] sm:$0xf]
    %v271 = vld [vmem:[#allocation5 + $0x2c] sm:$0xf]
    %v272 = vld [vmem:[#allocation5 + $0x38] sm:$0xf]
    %v273 = vld [vmem:[#allocation5 + $0x44] sm:$0xf]
    %v274 = vld [vmem:[#allocation5 + $0x50] sm:$0xf]
    %v275 = vld [vmem:[#allocation5 + $0x5c] sm:$0xf]
    %v276 = vld [vmem:[#allocation5 + $0x68] sm:$0xf]
    %v277 = vld [vmem:[#allocation5 + $0x74] sm:$0xf]
    %v278 = vld [vmem:[#allocation5 + $0x80] sm:$0xf]
    %v279 = vld [vmem:[#allocation5 + $0x8c] sm:$0xf]
    %v280 = vld [vmem:[#allocation5 + $0x98] sm:$0xf]
    %v281 = vld [vmem:[#allocation5 + $0xa4] sm:$0xf]
    %v282 = vld [vmem:[#allocation5 + $0xb0] sm:$0xf]
    %v283 = vld [vmem:[#allocation5 + $0xbc] sm:$0xf]
    %v284 = vlaneseq
    %v285 = vshrl.u32 %v284, 7
    %v286 = vsub.s32 4, %v285
    %v287 = vrot.slane %v44, %v286
    %v304 = vunpack.c.l.b16 %v268
    %v305 = vunpack.c.l.b16 %v269
    %v306 = vunpack.c.l.b16 %v270
    %v307 = vunpack.c.l.b16 %v271
    %v308 = vunpack.c.l.b16 %v272
    %v309 = vunpack.c.l.b16 %v273
    %v310 = vunpack.c.l.b16 %v274
    %v311 = vunpack.c.l.b16 %v275
    %v312 = vunpack.c.l.b16 %v276
    %v313 = vunpack.c.l.b16 %v277
    %v314 = vunpack.c.l.b16 %v278
    %v315 = vunpack.c.l.b16 %v279
    %v316 = vunpack.c.l.b16 %v280
    %v317 = vunpack.c.l.b16 %v281
    %v318 = vunpack.c.l.b16 %v282
    %v319 = vunpack.c.l.b16 %v283
    %v320 = vpack.c.b16 %v305, %v304
    %v321 = vpack.c.b16 %v307, %v306
    %v322 = vpack.c.b16 %v309, %v308
    %v323 = vpack.c.b16 %v311, %v310
    %v324 = vpack.c.b16 %v313, %v312
    %v325 = vpack.c.b16 %v315, %v314
    %v326 = vpack.c.b16 %v317, %v316
    %v327 = vpack.c.b16 %v319, %v318
    %336 = vmatprep.subr.bf16.mxu0 0
    %337 = vmatpush1.bf16.msra.mxu0 %v327
    %338 = vmatprep.subr.bf16.mxu0 0
    %339 = vmatpush1.bf16.msra.mxu0 %v326
    %340 = vmatprep.subr.bf16.mxu0 0
    %341 = vmatpush1.bf16.msra.mxu0 %v325
    %342 = vmatprep.subr.bf16.mxu0 0
    %343 = vmatpush1.bf16.msra.mxu0 %v324
    %344 = vmatprep.subr.bf16.mxu0 0
    %345 = vmatpush1.bf16.msra.mxu0 %v323
    %346 = vmatprep.subr.bf16.mxu0 0
    %347 = vmatpush1.bf16.msra.mxu0 %v322
    %348 = vmatprep.subr.bf16.mxu0 0
    %349 = vmatpush1.bf16.msra.mxu0 %v321
    %350 = vmatprep.subr.bf16.mxu0 0
    %351 = vmatpush1.bf16.msra.mxu0 %v320
    %352 = vmatprep.subr.bf16.mxu0 0
    %353 = vmatpush2.bf16.msra.mxu0 0
    %354 = vmatprep.subr.bf16.mxu0 0
    %355 = vmatpush2.bf16.msra.mxu0 0
    %356 = vmatprep.subr.bf16.mxu0 0
    %357 = vmatpush2.bf16.msra.mxu0 0
    %358 = vmatprep.subr.bf16.mxu0 0
    %359 = vmatpush2.bf16.msra.mxu0 0
    %360 = vmatprep.subr.bf16.mxu0 0
    %361 = vmatpush2.bf16.msra.mxu0 0
    %362 = vmatprep.subr.bf16.mxu0 0
    %363 = vmatpush2.bf16.msra.mxu0 0
    %364 = vmatprep.subr.bf16.mxu0 0
    %365 = vmatpush2.bf16.msra.mxu0 0
    %366 = vmatprep.subr.bf16.mxu0 0
    %367 = vmatpush2.bf16.msra.mxu0 0
    %368 = vmatprep.mubr.bf16.mxu0 0
    %369 = vmatmul.mubr.bf16.gmra.mxu0 %v267
    %v370 = vpop.f32.mrf.mxu0
    %v371 = vadd.f32 %v287, %v370
    %v372 = vpop.f32.mrf.mxu0
    %v373 = vpop.f32.mrf.mxu0
    %v374 = vpop.f32.mrf.mxu0
    %375 = vdwg.mxu0
    %376 = vmax.xlane.f32.xlu0 %v371
    %v377 = vpop.xlane.xlu0 %376
    %v378 = vsub.f32 %v371, %v377
    %v379 = vmul.f32 %v378, 1.442695
    %v380 = vpow.pop %v379
    %381 = vadd.xlane.f32.xlu0 %v380
    %v382 = vpop.xlane.xlu0 %381
    %v383 = vrcp.pop %v382
    %v384 = vmul.f32 %v380, %v383
    %385 = vst [vmem:[#allocation7] sm:$0xff] %v384
    // Predicated region
    $region18: #{tpu_custom_call.1} parent=1 // pred_check
      _
    $region19: #{tpu_custom_call.1} parent=1 // pred_check_branch
      %387 = sbr.rel (0) target = $region21
    $region20: #{tpu_custom_call.1} parent=1 // pred_region
      %s389 = ssub.s32 128, 128
      %390 = vsyncadd [#allocation4], %s389
      %s392 = sshll.u32 [#allocation7], 4
      %s393 = int_to_ptr.vmem [resolvable:$true] %s392
      %395 = dma.vmem_to_hbm [thread:$0]  %s393, 128, %s2, [#allocation4]
    $region21: #{tpu_custom_call.1} parent=1 // pred_fallthru
      _
    // Predicated region
    $region22: #{tpu_custom_call.1} parent=1 // pred_check
      _
    $region23: #{tpu_custom_call.1} parent=1 // pred_check_branch
      %397 = sbr.rel (0) target = $region25
    $region24: #{tpu_custom_call.1} parent=1 // pred_region
      %398 = dma.done [#allocation4], 128
    $region25: #{tpu_custom_call.1} parent=1 // pred_fallthru
      _
    %399 = vsyncpa [#allocation3], 1
    %400 = vsyncpa [#allocation6], 1
    %401 = vsyncpa [#allocation4], 1

</llo_original>
